<compile_context>
chip_gen: v6e
topology: v6e:2x2x1
jax: 0.10.0
libtpu: 0.0.40
codegen_flags: <defaults>
</compile_context>

<pallas_src>
import jax
import jax.numpy as jnp
from jax.experimental import pallas as pl
from jax.experimental.pallas import tpu as pltpu

EMBED = 32                      # embed_size
HEADS = 4
HEAD_DIM = EMBED // HEADS
FWD_EXP = 2                     # forward_expansion
HIDDEN = FWD_EXP * EMBED
LN_EPS = 1e-5                   # PyTorch nn.LayerNorm default


def _layer_norm(v, g, b):
    mu = jnp.mean(v, axis=-1, keepdims=True)
    var = jnp.mean((v - mu) ** 2, axis=-1, keepdims=True)
    return (v - mu) * jax.lax.rsqrt(var + LN_EPS) * g + b


def t_transformer_kernel(x_ref, temb_ref, wvo_ref, w1_ref, w2_ref, vec_ref,
                         out_ref):
    x = x_ref[...].astype(jnp.float32)             # (BNb, T, C)
    q = x + temb_ref[...]                          # temporal embedding (T, C) broadcast

    vec = vec_ref[...]                             # packed (8, HIDDEN) parameter rows
    bo, b1, b2 = vec[0, :EMBED], vec[1, :], vec[2, :EMBED]
    g1, be1 = vec[3, :EMBED], vec[4, :EMBED]
    g2, be2 = vec[5, :EMBED], vec[6, :EMBED]

    # --- T_SelfAttention -----------------------------------------------------
    # torch.einsum('bnhqk,bnvhd->bnqhd') contracts 'k' (attention) and 'v'
    # (values) independently; softmax rows sum to 1, so Q/K/softmax are
    # numerically dead and each head's output is sum_t V_h broadcast over the
    # query axis.  With V_h = q_h @ Wv and fc_out folded in
    # (Wvo = blockdiag(Wv, ..., Wv) @ Wo, built in the wrapper):
    #     att[:, t, :] = (sum_t' q[:, t', :]) @ Wvo + bo     for every t.
    s = jnp.sum(q, axis=1)                                                   # (BNb, C)
    att_row = jnp.dot(s, wvo_ref[...], preferred_element_type=jnp.float32) + bo

    # residual + norm1 (dropout = identity at inference)
    y = q + att_row[:, None, :]
    x1 = _layer_norm(y, g1, be1)                                             # (BNb, T, C)

    # --- feed forward: all rows of the slab in one pair of matmuls -----------
    x1_2d = x1.reshape(-1, EMBED)                                            # (BNb*T, C)
    h1 = jnp.maximum(
        jnp.dot(x1_2d, w1_ref[...], preferred_element_type=jnp.float32) + b1, 0.0)
    ff = jnp.dot(h1, w2_ref[...], preferred_element_type=jnp.float32) + b2
    ff = ff.reshape(x1.shape)

    # residual + norm2 (dropout = identity at inference)
    out = _layer_norm(ff + x1, g2, be2)
    out_ref[...] = out.astype(out_ref.dtype)


def t_transformer_forward(x, p):
    B, N, T, C = x.shape
    BN = B * N
    xf = x.reshape(BN, T, C)
    temb = p['temb'][:T]                           # Embedding(288, C)[arange(T)]

    # Fold per-head Wv (block-diagonal over heads) with fc_out Wo (trace time).
    wv_bd = jnp.kron(jnp.eye(HEADS, dtype=jnp.float32), p['wv'])             # (C, C)
    wvo = wv_bd @ p['wo']                                                    # (C, C)

    # Pack all bias / layer-norm vectors into one lane-aligned (8, HIDDEN) array.
    def pad_c(v):                                  # (1, C) -> (1, HIDDEN)
        return jnp.pad(v, ((0, 0), (0, HIDDEN - v.shape[1])))
    vec = jnp.concatenate(
        [pad_c(p['bo']), p['b1'], pad_c(p['b2']),
         pad_c(p['g1']), pad_c(p['be1']),
         pad_c(p['g2']), pad_c(p['be2']),
         jnp.zeros((1, HIDDEN), jnp.float32)], axis=0)                       # (8, HIDDEN)

    # Two parallel slabs when possible (one per TensorCore on v7x; near-free
    # elsewhere).  Everything fits trivially in VMEM on all generations.
    nblk = 2 if BN % 2 == 0 else 1
    bnb = BN // nblk

    def full_spec(shape):
        return pl.BlockSpec(shape, lambda i, _n=len(shape): (0,) * _n)

    out = pl.pallas_call(
        t_transformer_kernel,
        out_shape=jax.ShapeDtypeStruct((BN, T, C), jnp.float32),
        grid=(nblk,),
        in_specs=[
            pl.BlockSpec((bnb, T, C), lambda i: (i, 0, 0)),   # activation slab
            full_spec((T, C)),                                # temporal embedding
            full_spec((C, C)),                                # folded Wv|Wo
            full_spec((C, HIDDEN)),                           # FFN W1
            full_spec((HIDDEN, C)),                           # FFN W2
            full_spec((8, HIDDEN)),                           # packed vectors
        ],
        out_specs=pl.BlockSpec((bnb, T, C), lambda i: (i, 0, 0)),
        compiler_params=pltpu.CompilerParams(dimension_semantics=("parallel",)),
    )(xf, temb, wvo, p['w1'], p['w2'], vec)
    return out.reshape(B, N, T, C)


def t_transformer_reference(x, p):
    """Pure-JAX transcription of the PyTorch forward (full softmax path)."""
    B, N, T, C = x.shape
    temb = p['temb'][:T]
    q = x + temb
    qh = q.reshape(B, N, T, HEADS, HEAD_DIM)
    Q = jnp.einsum('bnthd,de->bnthe', qh, p['wq'])
    K = jnp.einsum('bnthd,de->bnthe', qh, p['wk'])
    V = jnp.einsum('bnthd,de->bnthe', qh, p['wv'])
    energy = jnp.einsum('bnqhd,bnkhd->bnhqk', Q, K)
    attn = jax.nn.softmax(energy / jnp.sqrt(jnp.float32(EMBED)), axis=4)
    ctx = jnp.einsum('bnhqk,bnvhd->bnqhd', attn, V).reshape(B, N, T, C)
    att = ctx @ p['wo'] + p['bo'][0]
    y = att + q
    x1 = _layer_norm(y, p['g1'][0], p['be1'][0])
    ff = jnp.maximum(x1 @ p['w1'] + p['b1'][0], 0.0) @ p['w2'] + p['b2'][0]
    return _layer_norm(ff + x1, p['g2'][0], p['be2'][0])


if __name__ == "__main__":
    key = jax.random.PRNGKey(0)
    ks = jax.random.split(key, 12)
    B, N, T = 2, 4, 8

    params = {
        'temb': 0.10 * jax.random.normal(ks[0], (288, EMBED), jnp.float32),
        'wq':   0.30 * jax.random.normal(ks[1], (HEAD_DIM, HEAD_DIM), jnp.float32),
        'wk':   0.30 * jax.random.normal(ks[2], (HEAD_DIM, HEAD_DIM), jnp.float32),
        'wv':   0.30 * jax.random.normal(ks[3], (HEAD_DIM, HEAD_DIM), jnp.float32),
        'wo':   0.15 * jax.random.normal(ks[4], (EMBED, EMBED), jnp.float32),
        'bo':   0.05 * jax.random.normal(ks[5], (1, EMBED), jnp.float32),
        'w1':   0.15 * jax.random.normal(ks[6], (EMBED, HIDDEN), jnp.float32),
        'b1':   0.05 * jax.random.normal(ks[7], (1, HIDDEN), jnp.float32),
        'w2':   0.15 * jax.random.normal(ks[8], (HIDDEN, EMBED), jnp.float32),
        'b2':   0.05 * jax.random.normal(ks[9], (1, EMBED), jnp.float32),
        'g1':   jnp.ones((1, EMBED), jnp.float32),
        'be1':  jnp.zeros((1, EMBED), jnp.float32),
        'g2':   jnp.ones((1, EMBED), jnp.float32),
        'be2':  jnp.zeros((1, EMBED), jnp.float32),
    }
    x = jax.random.normal(ks[10], (B, N, T, EMBED), jnp.float32)

    out = t_transformer_forward(x, params)
    jax.block_until_ready(out)

    ref = t_transformer_reference(x, params)
    assert out.shape == (B, N, T, EMBED)
    assert jnp.allclose(out, ref, atol=1e-3, rtol=1e-3), float(jnp.max(jnp.abs(out - ref)))
    print("KERNEL_OK")
</pallas_src>

<mosaic_0001>
module attributes {stable_mosaic.version = 11 : i64} {
  func.func @t_transformer_kernel(%arg0: i32, %arg1: memref<4x8x32xf32, #tpu.memory_space<vmem>>, %arg2: memref<8x32xf32, #tpu.memory_space<vmem>>, %arg3: memref<32x32xf32, #tpu.memory_space<vmem>>, %arg4: memref<32x64xf32, #tpu.memory_space<vmem>>, %arg5: memref<64x32xf32, #tpu.memory_space<vmem>>, %arg6: memref<8x64xf32, #tpu.memory_space<vmem>>, %arg7: memref<4x8x32xf32, #tpu.memory_space<vmem>>) attributes {dimension_semantics = [#tpu.dimension_semantics<parallel>], iteration_bounds = array<i64: 2>, scalar_prefetch = 0 : i64, scratch_operands = 0 : i64, tpu.core_type = #tpu.core_type<tc>, window_params = [{transform_indices = @transform_0, window_bounds = array<i64: 4, 8, 32>}, {pipeline_mode = #tpu.pipeline_mode<synchronous>, transform_indices = @transform_1, window_bounds = array<i64: 8, 32>}, {pipeline_mode = #tpu.pipeline_mode<synchronous>, transform_indices = @transform_2, window_bounds = array<i64: 32, 32>}, {pipeline_mode = #tpu.pipeline_mode<synchronous>, transform_indices = @transform_3, window_bounds = array<i64: 32, 64>}, {pipeline_mode = #tpu.pipeline_mode<synchronous>, transform_indices = @transform_4, window_bounds = array<i64: 64, 32>}, {pipeline_mode = #tpu.pipeline_mode<synchronous>, transform_indices = @transform_5, window_bounds = array<i64: 8, 64>}, {transform_indices = @transform_6, window_bounds = array<i64: 4, 8, 32>}]} {
    %c0 = arith.constant 0 : index
    %c0_0 = arith.constant 0 : index
    %c0_1 = arith.constant 0 : index
    %0 = vector.load %arg1[%c0, %c0_0, %c0_1] : memref<4x8x32xf32, #tpu.memory_space<vmem>>, vector<4x8x32xf32>
    %c0_2 = arith.constant 0 : index
    %c0_3 = arith.constant 0 : index
    %1 = vector.load %arg2[%c0_2, %c0_3] : memref<8x32xf32, #tpu.memory_space<vmem>>, vector<8x32xf32>
    %2 = vector.shape_cast %1 : vector<8x32xf32> to vector<1x8x32xf32>
    %3 = vector.broadcast %2 : vector<1x8x32xf32> to vector<4x8x32xf32>
    %4 = arith.addf %0, %3 : vector<4x8x32xf32>
    %c0_4 = arith.constant 0 : index
    %c0_5 = arith.constant 0 : index
    %5 = vector.load %arg6[%c0_4, %c0_5] : memref<8x64xf32, #tpu.memory_space<vmem>>, vector<8x64xf32>
    %6 = vector.extract_strided_slice %5 {offsets = [0, 0], sizes = [1, 32], strides = [1, 1]} : vector<8x64xf32> to vector<1x32xf32>
    %7 = vector.shape_cast %6 : vector<1x32xf32> to vector<32xf32>
    %8 = vector.extract_strided_slice %5 {offsets = [1, 0], sizes = [1, 64], strides = [1, 1]} : vector<8x64xf32> to vector<1x64xf32>
    %9 = vector.shape_cast %8 : vector<1x64xf32> to vector<64xf32>
    %10 = vector.extract_strided_slice %5 {offsets = [2, 0], sizes = [1, 32], strides = [1, 1]} : vector<8x64xf32> to vector<1x32xf32>
    %11 = vector.shape_cast %10 : vector<1x32xf32> to vector<32xf32>
    %12 = vector.extract_strided_slice %5 {offsets = [3, 0], sizes = [1, 32], strides = [1, 1]} : vector<8x64xf32> to vector<1x32xf32>
    %13 = vector.shape_cast %12 : vector<1x32xf32> to vector<32xf32>
    %14 = vector.extract_strided_slice %5 {offsets = [4, 0], sizes = [1, 32], strides = [1, 1]} : vector<8x64xf32> to vector<1x32xf32>
    %15 = vector.shape_cast %14 : vector<1x32xf32> to vector<32xf32>
    %16 = vector.extract_strided_slice %5 {offsets = [5, 0], sizes = [1, 32], strides = [1, 1]} : vector<8x64xf32> to vector<1x32xf32>
    %17 = vector.shape_cast %16 : vector<1x32xf32> to vector<32xf32>
    %18 = vector.extract_strided_slice %5 {offsets = [6, 0], sizes = [1, 32], strides = [1, 1]} : vector<8x64xf32> to vector<1x32xf32>
    %19 = vector.shape_cast %18 : vector<1x32xf32> to vector<32xf32>
    %cst = arith.constant dense<0.000000e+00> : vector<4x32xf32>
    %20 = vector.multi_reduction <add>, %4, %cst [1] : vector<4x8x32xf32> to vector<4x32xf32>
    %c0_6 = arith.constant 0 : index
    %c0_7 = arith.constant 0 : index
    %21 = vector.load %arg3[%c0_6, %c0_7] : memref<32x32xf32, #tpu.memory_space<vmem>>, vector<32x32xf32>
    %cst_8 = arith.constant dense<0.000000e+00> : vector<4x32xf32>
    %22 = tpu.matmul %20, %21, %cst_8 {dimension_numbers = #tpu.dot_dimension_numbers<[1], [0], [0], [1], [0, 0, 1, 1], [], []>} : vector<4x32xf32>, vector<32x32xf32>, vector<4x32xf32> -> vector<4x32xf32>
    %23 = vector.shape_cast %7 : vector<32xf32> to vector<1x32xf32>
    %24 = vector.broadcast %23 : vector<1x32xf32> to vector<4x32xf32>
    %25 = arith.addf %22, %24 : vector<4x32xf32>
    %26 = vector.shape_cast %25 : vector<4x32xf32> to vector<4x1x32xf32>
    %27 = vector.broadcast %26 : vector<4x1x32xf32> to vector<4x8x32xf32>
    %28 = arith.addf %4, %27 : vector<4x8x32xf32>
    %cst_9 = arith.constant dense<0.000000e+00> : vector<4x8xf32>
    %29 = vector.multi_reduction <add>, %28, %cst_9 [2] : vector<4x8x32xf32> to vector<4x8xf32>
    %30 = vector.shape_cast %29 : vector<4x8xf32> to vector<4x8x1xf32>
    %cst_10 = arith.constant 3.200000e+01 : f32
    %31 = vector.broadcast %cst_10 : f32 to vector<4x8x1xf32>
    %32 = arith.divf %30, %31 : vector<4x8x1xf32>
    %33 = vector.broadcast %32 : vector<4x8x1xf32> to vector<4x8x32xf32>
    %34 = arith.subf %28, %33 : vector<4x8x32xf32>
    %35 = arith.mulf %34, %34 : vector<4x8x32xf32>
    %cst_11 = arith.constant dense<0.000000e+00> : vector<4x8xf32>
    %36 = vector.multi_reduction <add>, %35, %cst_11 [2] : vector<4x8x32xf32> to vector<4x8xf32>
    %37 = vector.shape_cast %36 : vector<4x8xf32> to vector<4x8x1xf32>
    %cst_12 = arith.constant 3.200000e+01 : f32
    %38 = vector.broadcast %cst_12 : f32 to vector<4x8x1xf32>
    %39 = arith.divf %37, %38 : vector<4x8x1xf32>
    %40 = vector.broadcast %32 : vector<4x8x1xf32> to vector<4x8x32xf32>
    %41 = arith.subf %28, %40 : vector<4x8x32xf32>
    %cst_13 = arith.constant 9.99999974E-6 : f32
    %42 = vector.broadcast %cst_13 : f32 to vector<4x8x1xf32>
    %43 = arith.addf %39, %42 : vector<4x8x1xf32>
    %44 = math.rsqrt %43 : vector<4x8x1xf32>
    %45 = vector.broadcast %44 : vector<4x8x1xf32> to vector<4x8x32xf32>
    %46 = arith.mulf %41, %45 : vector<4x8x32xf32>
    %47 = vector.shape_cast %13 : vector<32xf32> to vector<1x1x32xf32>
    %48 = vector.broadcast %47 : vector<1x1x32xf32> to vector<4x8x32xf32>
    %49 = arith.mulf %46, %48 : vector<4x8x32xf32>
    %50 = vector.shape_cast %15 : vector<32xf32> to vector<1x1x32xf32>
    %51 = vector.broadcast %50 : vector<1x1x32xf32> to vector<4x8x32xf32>
    %52 = arith.addf %49, %51 : vector<4x8x32xf32>
    %53 = vector.shape_cast %52 : vector<4x8x32xf32> to vector<32x32xf32>
    %c0_14 = arith.constant 0 : index
    %c0_15 = arith.constant 0 : index
    %54 = vector.load %arg4[%c0_14, %c0_15] : memref<32x64xf32, #tpu.memory_space<vmem>>, vector<32x64xf32>
    %cst_16 = arith.constant dense<0.000000e+00> : vector<32x64xf32>
    %55 = tpu.matmul %53, %54, %cst_16 {dimension_numbers = #tpu.dot_dimension_numbers<[1], [0], [0], [1], [0, 0, 1, 1], [], []>} : vector<32x32xf32>, vector<32x64xf32>, vector<32x64xf32> -> vector<32x64xf32>
    %56 = vector.shape_cast %9 : vector<64xf32> to vector<1x64xf32>
    %57 = vector.broadcast %56 : vector<1x64xf32> to vector<32x64xf32>
    %58 = arith.addf %55, %57 : vector<32x64xf32>
    %cst_17 = arith.constant 0.000000e+00 : f32
    %59 = vector.broadcast %cst_17 : f32 to vector<32x64xf32>
    %60 = arith.maximumf %58, %59 : vector<32x64xf32>
    %c0_18 = arith.constant 0 : index
    %c0_19 = arith.constant 0 : index
    %61 = vector.load %arg5[%c0_18, %c0_19] : memref<64x32xf32, #tpu.memory_space<vmem>>, vector<64x32xf32>
    %cst_20 = arith.constant dense<0.000000e+00> : vector<32x32xf32>
    %62 = tpu.matmul %60, %61, %cst_20 {dimension_numbers = #tpu.dot_dimension_numbers<[1], [0], [0], [1], [0, 0, 1, 1], [], []>} : vector<32x64xf32>, vector<64x32xf32>, vector<32x32xf32> -> vector<32x32xf32>
    %63 = vector.shape_cast %11 : vector<32xf32> to vector<1x32xf32>
    %64 = vector.broadcast %63 : vector<1x32xf32> to vector<32x32xf32>
    %65 = arith.addf %62, %64 : vector<32x32xf32>
    %66 = vector.shape_cast %65 : vector<32x32xf32> to vector<4x8x32xf32>
    %67 = arith.addf %66, %52 : vector<4x8x32xf32>
    %cst_21 = arith.constant dense<0.000000e+00> : vector<4x8xf32>
    %68 = vector.multi_reduction <add>, %67, %cst_21 [2] : vector<4x8x32xf32> to vector<4x8xf32>
    %69 = vector.shape_cast %68 : vector<4x8xf32> to vector<4x8x1xf32>
    %cst_22 = arith.constant 3.200000e+01 : f32
    %70 = vector.broadcast %cst_22 : f32 to vector<4x8x1xf32>
    %71 = arith.divf %69, %70 : vector<4x8x1xf32>
    %72 = vector.broadcast %71 : vector<4x8x1xf32> to vector<4x8x32xf32>
    %73 = arith.subf %67, %72 : vector<4x8x32xf32>
    %74 = arith.mulf %73, %73 : vector<4x8x32xf32>
    %cst_23 = arith.constant dense<0.000000e+00> : vector<4x8xf32>
    %75 = vector.multi_reduction <add>, %74, %cst_23 [2] : vector<4x8x32xf32> to vector<4x8xf32>
    %76 = vector.shape_cast %75 : vector<4x8xf32> to vector<4x8x1xf32>
    %cst_24 = arith.constant 3.200000e+01 : f32
    %77 = vector.broadcast %cst_24 : f32 to vector<4x8x1xf32>
    %78 = arith.divf %76, %77 : vector<4x8x1xf32>
    %79 = vector.broadcast %71 : vector<4x8x1xf32> to vector<4x8x32xf32>
    %80 = arith.subf %67, %79 : vector<4x8x32xf32>
    %cst_25 = arith.constant 9.99999974E-6 : f32
    %81 = vector.broadcast %cst_25 : f32 to vector<4x8x1xf32>
    %82 = arith.addf %78, %81 : vector<4x8x1xf32>
    %83 = math.rsqrt %82 : vector<4x8x1xf32>
    %84 = vector.broadcast %83 : vector<4x8x1xf32> to vector<4x8x32xf32>
    %85 = arith.mulf %80, %84 : vector<4x8x32xf32>
    %86 = vector.shape_cast %17 : vector<32xf32> to vector<1x1x32xf32>
    %87 = vector.broadcast %86 : vector<1x1x32xf32> to vector<4x8x32xf32>
    %88 = arith.mulf %85, %87 : vector<4x8x32xf32>
    %89 = vector.shape_cast %19 : vector<32xf32> to vector<1x1x32xf32>
    %90 = vector.broadcast %89 : vector<1x1x32xf32> to vector<4x8x32xf32>
    %91 = arith.addf %88, %90 : vector<4x8x32xf32>
    %c0_26 = arith.constant 0 : index
    %c0_27 = arith.constant 0 : index
    %c0_28 = arith.constant 0 : index
    %92 = vector.load %arg7[%c0_26, %c0_27, %c0_28] : memref<4x8x32xf32, #tpu.memory_space<vmem>>, vector<4x8x32xf32>
    tpu.vector_store %arg7[%c0_26, %c0_27, %c0_28], %91 {strides = array<i32>} : memref<4x8x32xf32, #tpu.memory_space<vmem>>, vector<4x8x32xf32>,
    return
  }
  func.func @transform_0(%arg0: i32) -> (i32, i32, i32) {
    %c0_i32 = arith.constant 0 : i32
    %c0_i32_0 = arith.constant 0 : i32
    %c0_i32_1 = arith.constant 0 : i32
    return %arg0, %c0_i32, %c0_i32_0 : i32, i32, i32
  }
  func.func @transform_1(%arg0: i32) -> (i32, i32) {
    %c0_i32 = arith.constant 0 : i32
    %c0_i32_0 = arith.constant 0 : i32
    %c0_i32_1 = arith.constant 0 : i32
    return %c0_i32, %c0_i32_0 : i32, i32
  }
  func.func @transform_2(%arg0: i32) -> (i32, i32) {
    %c0_i32 = arith.constant 0 : i32
    %c0_i32_0 = arith.constant 0 : i32
    %c0_i32_1 = arith.constant 0 : i32
    return %c0_i32, %c0_i32_0 : i32, i32
  }
  func.func @transform_3(%arg0: i32) -> (i32, i32) {
    %c0_i32 = arith.constant 0 : i32
    %c0_i32_0 = arith.constant 0 : i32
    %c0_i32_1 = arith.constant 0 : i32
    return %c0_i32, %c0_i32_0 : i32, i32
  }
  func.func @transform_4(%arg0: i32) -> (i32, i32) {
    %c0_i32 = arith.constant 0 : i32
    %c0_i32_0 = arith.constant 0 : i32
    %c0_i32_1 = arith.constant 0 : i32
    return %c0_i32, %c0_i32_0 : i32, i32
  }
  func.func @transform_5(%arg0: i32) -> (i32, i32) {
    %c0_i32 = arith.constant 0 : i32
    %c0_i32_0 = arith.constant 0 : i32
    %c0_i32_1 = arith.constant 0 : i32
    return %c0_i32, %c0_i32_0 : i32, i32
  }
  func.func @transform_6(%arg0: i32) -> (i32, i32, i32) {
    %c0_i32 = arith.constant 0 : i32
    %c0_i32_0 = arith.constant 0 : i32
    %c0_i32_1 = arith.constant 0 : i32
    return %arg0, %c0_i32, %c0_i32_0 : i32, i32, i32
  }
}

</mosaic_0001>

<llo_original>
// kernel: tpu_custom_call.1
$region0: #{tpu_custom_call.1}
  #allocation0 [shape = 'u32[]', space=smem, size = 0x4, offset = 0x4, fixed_abs, tag = 'smem constant byte address 0x4 - core index']
  #allocation1 [shape = 'u32[144,128]{1,0:T(1,128)}', space=vmem, size = 0x12000, scoped, tag = 'internal scratch']
  %s0 = inlined_call_operand.vmem [shape: f32[8,8,32], index: 0, kind: input, shape index: {}]
  %s1 = inlined_call_operand.hbm [shape: f32[8,32], index: 1, kind: input, shape index: {}]
  %s2 = inlined_call_operand.vmem [shape: f32[32,32], index: 2, kind: input, shape index: {}]
  %s3 = inlined_call_operand.hbm [shape: f32[32,64], index: 3, kind: input, shape index: {}]
  %s4 = inlined_call_operand.vmem [shape: f32[64,32], index: 4, kind: input, shape index: {}]
  %s5 = inlined_call_operand.vmem [shape: f32[8,64], index: 5, kind: input, shape index: {}]
  %s6 = inlined_call_operand.hbm [shape: f32[8,8,32], index: 6, kind: output, shape index: {}]
  %s7 = sld [smem:[#allocation0]]
  $region65: #{tpu_custom_call.1} parent=0
    _
  %s9 = ssub.s32 1, %s7
  %s10 = scalar_select 0, %s9, %s7
  $region1: #{tpu_custom_call.1} parent=0
    #allocation2 [shape = 'u8[4096]{0}', space=vmem, size = 0x1000, scoped, tag = 'input window, operand 1, single buffered']
    #allocation3 [shape = 's32[2]{0}', space=sflag, size = 0x8, scoped, tag = 'scoped memory for tpu_custom_call.1']
    #allocation4 [shape = 's32[2]{0}', space=sflag, size = 0x8, scoped, tag = 'scoped memory for tpu_custom_call.1']
    #allocation5 [shape = 'u8[16384]{0}', space=vmem, size = 0x4000, scoped, tag = 'input window, operand 3, single buffered']
    #allocation6 [shape = 's32[1]{0}', space=sflag, size = 0x4, scoped, tag = 'scoped memory for tpu_custom_call.1']
    #allocation7 [shape = 'u8[32768]{0}', space=vmem, size = 0x8000, scoped, tag = 'output window, operand 0']
    %11 = vsyncpa [#allocation3], 0
    %12 = vsyncpa [#allocation6], 0
    %13 = vsyncpa [#allocation4], 0
    %s14 = scalar_lea.sflag [#allocation4], 1
    %15 = vsyncpa %s14, 0
    loop: start=0, step=1, limit=4
    $region2: #{tpu_custom_call.1} parent=1 // loop_pre_header
      _
    $region3: #{tpu_custom_call.1} parent=1 // loop_header
      %s17 = sphi 0, %s21
      %p18 = scmp.ge.s32.totalorder %s17, 4
      %s27 = sphi 0, %s29
      %s30 = sphi 0, %s27
      %s31 = sphi 0, %s30
      %s47 = sphi 0, %s31
      %s51 = sphi 0, %s51
      %s53 = sphi 0, %s51
      %s54 = sphi 0, %s53
      %s68 = sphi 0, %s54
      %s72 = sphi 0, %s72
      %s74 = sphi 0, %s72
      %s75 = sphi 0, %s74
      %s89 = sphi 0, %s75
      %s93 = sphi 0, %s93
      %s95 = sphi 0, %s93
      %s96 = sphi 0, %s95
      %s110 = sphi 0, %s96
      %s114 = sphi 0, %s114
      %s116 = sphi 0, %s114
      %s117 = sphi 0, %s116
      %s131 = sphi 0, %s117
      %s135 = sphi 0, %s135
      %s137 = sphi 0, %s135
      %s138 = sphi 0, %s137
      %s152 = sphi 0, %s138
      %s158 = sphi 0, %s160
      %s161 = sphi 0, %s158
      %s162 = sphi 0, %s161
      %s178 = sphi 0, %s162
    $region4: #{tpu_custom_call.1} parent=1 // loop_header_branch
      %20 = sbr.rel (%p18) target = $region8
    $region5: #{tpu_custom_call.1} parent=1 // loop_body
      %s22 = ssub.s32 %s17, 1
      %s23 = ssub.s32 %s17, 2
      %s24 = sadd.s32 %s17, 1
      %s25 = ssub.s32 %s17, %s24
      %p26 = scmp.eq.s32.totalorder %s25, 0
      %s28 = sadd.s32 %s27, 1
      %s29 = scalar_select %p26, %s27, %s28
      %p32 = pneg %p26
      %p33 = scmp.eq.s32.totalorder %s17, 1
      %p34 = por %p32, %p33
      %p35 = scmp.ne.s32.totalorder %s27, %s30
      %p36 = scmp.eq.s32.totalorder %s17, 0
      %p37 = por %p35, %p36
      %p38 = scmp.ne.s32.totalorder %s27, %s30
      %p39 = scmp.eq.s32.totalorder %s22, 1
      %p40 = por %p38, %p39
      %p41 = scmp.ne.s32.totalorder %s30, %s31
      %p42 = scmp.eq.s32.totalorder %s22, 0
      %p43 = por %p41, %p42
      %p44 = scmp.ne.s32.totalorder %s30, %s31
      %p45 = scmp.eq.s32.totalorder %s23, 1
      %p46 = por %p44, %p45
      %p48 = scmp.ne.s32.totalorder %s31, %s47
      %p49 = scmp.eq.s32.totalorder %s23, 0
      %p50 = por %p48, %p49
      %s52 = sadd.s32 %s51, 1
      %p55 = scmp.eq.s32.totalorder %s17, 1
      %p56 = scmp.ne.s32.totalorder %s51, %s53
      %p57 = scmp.eq.s32.totalorder %s17, 0
      %p58 = por %p56, %p57
      %p59 = scmp.ne.s32.totalorder %s51, %s53
      %p60 = scmp.eq.s32.totalorder %s22, 1
      %p61 = por %p59, %p60
      %p62 = scmp.ne.s32.totalorder %s53, %s54
      %p63 = scmp.eq.s32.totalorder %s22, 0
      %p64 = por %p62, %p63
      %p65 = scmp.ne.s32.totalorder %s53, %s54
      %p66 = scmp.eq.s32.totalorder %s23, 1
      %p67 = por %p65, %p66
      %p69 = scmp.ne.s32.totalorder %s54, %s68
      %p70 = scmp.eq.s32.totalorder %s23, 0
      %p71 = por %p69, %p70
      %s73 = sadd.s32 %s72, 1
      %p76 = scmp.eq.s32.totalorder %s17, 1
      %p77 = scmp.ne.s32.totalorder %s72, %s74
      %p78 = scmp.eq.s32.totalorder %s17, 0
      %p79 = por %p77, %p78
      %p80 = scmp.ne.s32.totalorder %s72, %s74
      %p81 = scmp.eq.s32.totalorder %s22, 1
      %p82 = por %p80, %p81
      %p83 = scmp.ne.s32.totalorder %s74, %s75
      %p84 = scmp.eq.s32.totalorder %s22, 0
      %p85 = por %p83, %p84
      %p86 = scmp.ne.s32.totalorder %s74, %s75
      %p87 = scmp.eq.s32.totalorder %s23, 1
      %p88 = por %p86, %p87
      %p90 = scmp.ne.s32.totalorder %s75, %s89
      %p91 = scmp.eq.s32.totalorder %s23, 0
      %p92 = por %p90, %p91
      %s94 = sadd.s32 %s93, 1
      %p97 = scmp.eq.s32.totalorder %s17, 1
      %p98 = scmp.ne.s32.totalorder %s93, %s95
      %p99 = scmp.eq.s32.totalorder %s17, 0
      %p100 = por %p98, %p99
      %p101 = scmp.ne.s32.totalorder %s93, %s95
      %p102 = scmp.eq.s32.totalorder %s22, 1
      %p103 = por %p101, %p102
      %p104 = scmp.ne.s32.totalorder %s95, %s96
      %p105 = scmp.eq.s32.totalorder %s22, 0
      %p106 = por %p104, %p105
      %p107 = scmp.ne.s32.totalorder %s95, %s96
      %p108 = scmp.eq.s32.totalorder %s23, 1
      %p109 = por %p107, %p108
      %p111 = scmp.ne.s32.totalorder %s96, %s110
      %p112 = scmp.eq.s32.totalorder %s23, 0
      %p113 = por %p111, %p112
      %s115 = sadd.s32 %s114, 1
      %p118 = scmp.eq.s32.totalorder %s17, 1
      %p119 = scmp.ne.s32.totalorder %s114, %s116
      %p120 = scmp.eq.s32.totalorder %s17, 0
      %p121 = por %p119, %p120
      %p122 = scmp.ne.s32.totalorder %s114, %s116
      %p123 = scmp.eq.s32.totalorder %s22, 1
      %p124 = por %p122, %p123
      %p125 = scmp.ne.s32.totalorder %s116, %s117
      %p126 = scmp.eq.s32.totalorder %s22, 0
      %p127 = por %p125, %p126
      %p128 = scmp.ne.s32.totalorder %s116, %s117
      %p129 = scmp.eq.s32.totalorder %s23, 1
      %p130 = por %p128, %p129
      %p132 = scmp.ne.s32.totalorder %s117, %s131
      %p133 = scmp.eq.s32.totalorder %s23, 0
      %p134 = por %p132, %p133
      %s136 = sadd.s32 %s135, 1
      %p139 = scmp.eq.s32.totalorder %s17, 1
      %p140 = scmp.ne.s32.totalorder %s135, %s137
      %p141 = scmp.eq.s32.totalorder %s17, 0
      %p142 = por %p140, %p141
      %p143 = scmp.ne.s32.totalorder %s135, %s137
      %p144 = scmp.eq.s32.totalorder %s22, 1
      %p145 = por %p143, %p144
      %p146 = scmp.ne.s32.totalorder %s137, %s138
      %p147 = scmp.eq.s32.totalorder %s22, 0
      %p148 = por %p146, %p147
      %p149 = scmp.ne.s32.totalorder %s137, %s138
      %p150 = scmp.eq.s32.totalorder %s23, 1
      %p151 = por %p149, %p150
      %p153 = scmp.ne.s32.totalorder %s138, %s152
      %p154 = scmp.eq.s32.totalorder %s23, 0
      %p155 = por %p153, %p154
      %s156 = ssub.s32 %s17, %s24
      %p157 = scmp.eq.s32.totalorder %s156, 0
      %s159 = sadd.s32 %s158, 1
      %s160 = scalar_select %p157, %s158, %s159
      %p163 = pneg %p157
      %p164 = scmp.eq.s32.totalorder %s17, 1
      %p165 = por %p163, %p164
      %p166 = scmp.ne.s32.totalorder %s158, %s161
      %p167 = scmp.eq.s32.totalorder %s17, 0
      %p168 = por %p166, %p167
      %p169 = scmp.ne.s32.totalorder %s158, %s161
      %p170 = scmp.eq.s32.totalorder %s22, 1
      %p171 = por %p169, %p170
      %p172 = scmp.ne.s32.totalorder %s161, %s162
      %p173 = scmp.eq.s32.totalorder %s22, 0
      %p174 = por %p172, %p173
      %p175 = scmp.ne.s32.totalorder %s161, %s162
      %p176 = scmp.eq.s32.totalorder %s23, 1
      %p177 = por %p175, %p176
      %p179 = scmp.ne.s32.totalorder %s162, %s178
      %p180 = scmp.eq.s32.totalorder %s23, 0
      %p181 = por %p179, %p180
      %p182 = scmp.le.s32.totalorder 1, %s17
      %p183 = scmp.lt.s32.totalorder %s17, 3
      %p184 = pnand %p182, %p183
      %p185 = pneg %p184
      // Predicated region
      $region9: #{tpu_custom_call.1} parent=5 // pred_check
        _
      $region10: #{tpu_custom_call.1} parent=5 // pred_check_branch
        %187 = sbr.rel (%p184) target = $region12
      $region11: #{tpu_custom_call.1} parent=5 // pred_region
        %s188 = ssub.s32 %s17, 1
        // Predicated region
        $region13: #{tpu_custom_call.1} parent=11 // pred_check
          %p189 = pneg %p64
        $region14: #{tpu_custom_call.1} parent=11 // pred_check_branch
          %191 = sbr.rel (%p189) target = $region16
        $region15: #{tpu_custom_call.1} parent=11 // pred_region
          %s193 = ssub.s32 128, 128
          %194 = vsyncadd [#allocation3], %s193
          %s196 = sshll.u32 [#allocation2], 4
          %s197 = int_to_ptr.vmem [resolvable:$true] %s196
          %199 = dma.hbm_to_vmem [thread:$0]  %s1, 128, %s197, [#allocation3]
        $region16: #{tpu_custom_call.1} parent=11 // pred_fallthru
          _
        // Predicated region
        $region17: #{tpu_custom_call.1} parent=11 // pred_check
          %p200 = pneg %p85
        $region18: #{tpu_custom_call.1} parent=11 // pred_check_branch
          %202 = sbr.rel (%p200) target = $region20
        $region19: #{tpu_custom_call.1} parent=11 // pred_region
          _
        $region20: #{tpu_custom_call.1} parent=11 // pred_fallthru
          _
        // Predicated region
        $region21: #{tpu_custom_call.1} parent=11 // pred_check
          %p203 = pneg %p106
        $region22: #{tpu_custom_call.1} parent=11 // pred_check_branch
          %205 = sbr.rel (%p203) target = $region24
        $region23: #{tpu_custom_call.1} parent=11 // pred_region
          %s207 = ssub.s32 512, 512
          %208 = vsyncadd [#allocation6], %s207
          %s209 = sshll.u32 [#allocation5], 4
          %s210 = int_to_ptr.vmem [resolvable:$true] %s209
          %215 = dma.hbm_to_vmem [thread:$0]  %s3, 512, %s210, [#allocation6], 128, 128, 8
        $region24: #{tpu_custom_call.1} parent=11 // pred_fallthru
          _
        // Predicated region
        $region25: #{tpu_custom_call.1} parent=11 // pred_check
          %p216 = pneg %p127
        $region26: #{tpu_custom_call.1} parent=11 // pred_check_branch
          %218 = sbr.rel (%p216) target = $region28
        $region27: #{tpu_custom_call.1} parent=11 // pred_region
          _
        $region28: #{tpu_custom_call.1} parent=11 // pred_fallthru
          _
        // Predicated region
        $region29: #{tpu_custom_call.1} parent=11 // pred_check
          %p219 = pneg %p148
        $region30: #{tpu_custom_call.1} parent=11 // pred_check_branch
          %221 = sbr.rel (%p219) target = $region32
        $region31: #{tpu_custom_call.1} parent=11 // pred_region
          _
        $region32: #{tpu_custom_call.1} parent=11 // pred_fallthru
          _
      $region12: #{tpu_custom_call.1} parent=5 // pred_fallthru
        _
      %p222 = scmp.lt.s32.totalorder %s17, 2
      // Predicated region
      $region33: #{tpu_custom_call.1} parent=5 // pred_check
        %p223 = pneg %p222
      $region34: #{tpu_custom_call.1} parent=5 // pred_check_branch
        %225 = sbr.rel (%p223) target = $region36
      $region35: #{tpu_custom_call.1} parent=5 // pred_region
        // Predicated region
        $region37: #{tpu_custom_call.1} parent=35 // pred_check
          %p226 = pneg %p37
        $region38: #{tpu_custom_call.1} parent=35 // pred_check_branch
          %228 = sbr.rel (%p226) target = $region40
        $region39: #{tpu_custom_call.1} parent=35 // pred_region
          %s229 = smul.u32 4, %s17
          %p230 = scmp.lt.s32.totalorder %s229, 7
          %s231 = scalar_select %p230, %s229, 7
          %s232 = smul.addr %s231, 8
          %s233 = scalar_lea.vmem %s0, %s232
          %s234 = smul.u32 4, %s17
        $region40: #{tpu_custom_call.1} parent=35 // pred_fallthru
          _
      $region36: #{tpu_custom_call.1} parent=5 // pred_fallthru
        _
      %p235 = scmp.le.s32.totalorder 1, %s17
      %p236 = scmp.lt.s32.totalorder %s17, 3
      %p237 = pnand %p235, %p236
      %p238 = pneg %p237
      // Predicated region
      $region41: #{tpu_custom_call.1} parent=5 // pred_check
        _
      $region42: #{tpu_custom_call.1} parent=5 // pred_check_branch
        %240 = sbr.rel (%p237) target = $region44
      $region43: #{tpu_custom_call.1} parent=5 // pred_region
        %s241 = ssub.s32 %s17, 1
        // Predicated region
        $region45: #{tpu_custom_call.1} parent=43 // pred_check
          %p242 = pneg %p64
        $region46: #{tpu_custom_call.1} parent=43 // pred_check_branch
          %244 = sbr.rel (%p242) target = $region48
        $region47: #{tpu_custom_call.1} parent=43 // pred_region
          %245 = dma.done [#allocation3], 128
        $region48: #{tpu_custom_call.1} parent=43 // pred_fallthru
          _
        // Predicated region
        $region49: #{tpu_custom_call.1} parent=43 // pred_check
          %p246 = pneg %p106
        $region50: #{tpu_custom_call.1} parent=43 // pred_check_branch
          %248 = sbr.rel (%p246) target = $region52
        $region51: #{tpu_custom_call.1} parent=43 // pred_region
          %249 = dma.done [#allocation6], 512
        $region52: #{tpu_custom_call.1} parent=43 // pred_fallthru
          _
        %s250 = smul.u32 4, %s22
        %p251 = scmp.lt.s32.totalorder %s250, 7
        %s252 = scalar_select %p251, %s250, 7
        %s253 = smul.addr %s252, 8
        %s254 = scalar_lea.vmem %s0, %s253
        %p255 = pneg %p43
        %p256 = pneg %p40
        %p257 = pneg %p64
        %p258 = pneg %p61
        %p259 = pneg %p85
        %p260 = pneg %p82
        %p261 = pneg %p106
        %p262 = pneg %p103
        %p263 = pneg %p127
        %p264 = pneg %p124
        %p265 = pneg %p148
        %p266 = pneg %p145
        %p267 = pneg %p174
        %p268 = pneg %p171
        %s269 = sand.u32 %s161, 1
        %s270 = scalar_lea.sflag [#allocation4], %s269
        %s271 = sand.u32 %s161, 1
        %s272 = smul.addr %s271, 32
        %s273 = scalar_lea.vmem [#allocation7], %s272
        %s274 = smul.u32 4, %s22
        %p275 = scmp.lt.s32.totalorder %s274, 7
        %s276 = scalar_select %p275, %s274, 7
        %s277 = smul.addr %s276, 8
        %s278 = scalar_lea.vmem %s0, %s277
        %s279 = smul.u32 4, %s22
        %s280 = smul.u32 4, %s22
        %v281 = vld [vmem:[%s278] sm:$0xff]
        %v282 = vld [vmem:[%s278 + $0x8] sm:$0xff]
        %v283 = vld [vmem:[%s278 + $0x10] sm:$0xff]
        %v284 = vld [vmem:[%s278 + $0x18] sm:$0xff]
        %v285 = vld [vmem:[#allocation2] sm:$0xff]
        %v286 = vadd.f32 %v281, %v285
        %v287 = vadd.f32 %v282, %v285
        %v288 = vadd.f32 %v283, %v285
        %v289 = vadd.f32 %v284, %v285
        %v290 = vld [vmem:[%s5] sm:$0xff]
        %vm291 = vcmask 261120
        %v292 = vsel %vm291, %v286, 0.0
        %v293 = vrot.slane %v292, 4
        %v294 = vadd.f32 %v292, %v293
        %v295 = vrot.slane %v294, 2
        %v296 = vadd.f32 %v294, %v295
        %v297 = vrot.slane %v296, 1
        %v298 = vadd.f32 %v296, %v297
        %v299 = vsel %vm291, %v287, 0.0
        %v300 = vrot.slane %v299, 4
        %v301 = vadd.f32 %v299, %v300
        %v302 = vrot.slane %v301, 2
        %v303 = vadd.f32 %v301, %v302
        %v304 = vrot.slane %v303, 1
        %v305 = vadd.f32 %v303, %v304
        %v306 = vsel %vm291, %v288, 0.0
        %v307 = vrot.slane %v306, 4
        %v308 = vadd.f32 %v306, %v307
        %v309 = vrot.slane %v308, 2
        %v310 = vadd.f32 %v308, %v309
        %v311 = vrot.slane %v310, 1
        %v312 = vadd.f32 %v310, %v311
        %v313 = vsel %vm291, %v289, 0.0
        %v314 = vrot.slane %v313, 4
        %v315 = vadd.f32 %v313, %v314
        %v316 = vrot.slane %v315, 2
        %v317 = vadd.f32 %v315, %v316
        %v318 = vrot.slane %v317, 1
        %v319 = vadd.f32 %v317, %v318
        %v320 = vld [vmem:[%s2] sm:$0xff]
        %v321 = vld [vmem:[%s2 + $0x8] sm:$0xff]
        %v322 = vld [vmem:[%s2 + $0x10] sm:$0xff]
        %v323 = vld [vmem:[%s2 + $0x18] sm:$0xff]
        %v324 = vlaneseq
        %v325 = vshrl.u32 %v324, 7
        %v326 = vsub.s32 0, %v325
        %v327 = vrot.slane %v290, %v326
        %vm332 = vcmask 1041409
        %v333 = vsel %vm332, %v305, %v298
        %vm334 = vcmask 1042434
        %v335 = vsel %vm334, %v312, %v333
        %vm336 = vcmask 1043459
        %v337 = vsel %vm336, %v319, %v335
        %v338 = vsel %vm291, %v337, 0
        %340 = vmatprep.subr.mxu0 0.0
        %341 = vmatpush1.msra.mxu0 0.0
        %342 = vmatprep.subr.mxu0 0.0
        %343 = vmatpush1.msra.mxu0 0.0
        %344 = vmatprep.subr.mxu0 0.0
        %345 = vmatpush1.msra.mxu0 0.0
        %346 = vmatprep.subr.mxu0 0.0
        %347 = vmatpush1.msra.mxu0 0.0
        %348 = vmatprep.subr.mxu0 0.0
        %349 = vmatpush1.msra.mxu0 0.0
        %350 = vmatprep.subr.mxu0 0.0
        %351 = vmatpush1.msra.mxu0 0.0
        %352 = vmatprep.subr.mxu0 0.0
        %353 = vmatpush1.msra.mxu0 0.0
        %354 = vmatprep.subr.mxu0 0.0
        %355 = vmatpush1.msra.mxu0 0.0
        %356 = vmatprep.subr.mxu0 0.0
        %357 = vmatpush1.msra.mxu0 0.0
        %358 = vmatprep.subr.mxu0 0.0
        %359 = vmatpush1.msra.mxu0 0.0
        %360 = vmatprep.subr.mxu0 0.0
        %361 = vmatpush1.msra.mxu0 0.0
        %362 = vmatprep.subr.mxu0 0.0
        %363 = vmatpush1.msra.mxu0 0.0
        %364 = vmatprep.subr.mxu0 0.0
        %365 = vmatpush1.msra.mxu0 %v323
        %366 = vmatprep.subr.mxu0 0.0
        %367 = vmatpush1.msra.mxu0 %v322
        %368 = vmatprep.subr.mxu0 0.0
        %369 = vmatpush1.msra.mxu0 %v321
        %370 = vmatprep.subr.mxu0 0.0
        %371 = vmatpush1.msra.mxu0 %v320
        %372 = vmatprep.subr.mxu0 0.0
        %373 = vmatpush2.msra.mxu0 0.0
        %374 = vmatprep.subr.mxu0 0.0
        %375 = vmatpush2.msra.mxu0 0.0
        %376 = vmatprep.subr.mxu0 0.0
        %377 = vmatpush2.msra.mxu0 0.0
        %378 = vmatprep.subr.mxu0 0.0
        %379 = vmatpush2.msra.mxu0 0.0
        %380 = vmatprep.subr.mxu0 0.0
        %381 = vmatpush2.msra.mxu0 0.0
        %382 = vmatprep.subr.mxu0 0.0
        %383 = vmatpush2.msra.mxu0 0.0
        %384 = vmatprep.subr.mxu0 0.0
        %385 = vmatpush2.msra.mxu0 0.0
        %386 = vmatprep.subr.mxu0 0.0
        %387 = vmatpush2.msra.mxu0 0.0
        %388 = vmatprep.subr.mxu0 0.0
        %389 = vmatpush2.msra.mxu0 0.0
        %390 = vmatprep.subr.mxu0 0.0
        %391 = vmatpush2.msra.mxu0 0.0
        %392 = vmatprep.subr.mxu0 0.0
        %393 = vmatpush2.msra.mxu0 0.0
        %394 = vmatprep.subr.mxu0 0.0
        %395 = vmatpush2.msra.mxu0 0.0
        %396 = vmatprep.subr.mxu0 0.0
        %397 = vmatpush2.msra.mxu0 0.0
        %398 = vmatprep.subr.mxu0 0.0
        %399 = vmatpush2.msra.mxu0 0.0
        %400 = vmatprep.subr.mxu0 0.0
        %401 = vmatpush2.msra.mxu0 0.0
        %402 = vmatprep.subr.mxu0 0.0
        %403 = vmatpush2.msra.mxu0 0.0
        %404 = vmatprep.mubr.f32.mxu0 0.0
        %405 = vmatmul.mubr.f32.gmra.mxu0 %v338
        %v406 = vpop.f32.mrf.mxu0
        %v407 = vadd.f32 %v327, %v406
        %v408 = vpop.f32.mrf.mxu0
        %409 = vdwg.mxu0
        %v412 = vunpack.c.l.s4 1966171168
        %v413 = vunpack.c.0.s8 %v412
        %v414 = vlaneseq
        %v415 = vshrl.u32 %v414, 7
        %v416 = vsub.s32 %v413, %v415
        %v417 = vrot.slane %v407, %v416
        %v418 = vcombine.high %v417, %v417
        %v420 = vunpack.c.l.s4 1966171168
        %v421 = vunpack.c.0.s8 %v420
        %v422 = vlaneseq
        %v423 = vshrl.u32 %v422, 7
        %v424 = vsub.s32 %v421, %v423
        %v425 = vrot.slane %v417, %v424
        %v427 = vunpack.c.l.s4 1966171168
        %v428 = vunpack.c.0.s8 %v427
        %v429 = vlaneseq
        %v430 = vshrl.u32 %v429, 7
        %v431 = vsub.s32 %v428, %v430
        %v432 = vrot.slane %v418, %v431
        %v433 = vcombine.high %v425, %v425
        %v434 = vcombine.high %v432, %v432
        %v435 = vlaneseq
        %v436 = vshrl.u32 %v435, 7
        %v437 = vsub.s32 0, %v436
        %v438 = vrot.slane %v425, %v437
        %v439 = vlaneseq
        %v440 = vshrl.u32 %v439, 7
        %v441 = vsub.s32 0, %v440
        %v442 = vrot.slane %v432, %v441
        %v443 = vlaneseq
        %v444 = vshrl.u32 %v443, 7
        %v445 = vsub.s32 0, %v444
        %v446 = vrot.slane %v433, %v445
        %v447 = vlaneseq
        %v448 = vshrl.u32 %v447, 7
        %v449 = vsub.s32 0, %v448
        %v450 = vrot.slane %v434, %v449
        %v455 = vadd.f32 %v286, %v438
        %v456 = vadd.f32 %v287, %v442
        %v457 = vadd.f32 %v288, %v446
        %v458 = vadd.f32 %v289, %v450
        %v459 = vsel %vm291, %v455, 0.0
        %460 = vadd.xlane.f32.xlu0 %v459
        %v461 = vpop.xlane.xlu0 %460
        %v462 = vsel %vm291, %v456, 0.0
        %463 = vadd.xlane.f32.xlu0 %v462
        %v464 = vpop.xlane.xlu0 %463
        %v465 = vsel %vm291, %v457, 0.0
        %466 = vadd.xlane.f32.xlu0 %v465
        %v467 = vpop.xlane.xlu0 %466
        %v468 = vsel %vm291, %v458, 0.0
        %469 = vadd.xlane.f32.xlu0 %v468
        %v470 = vpop.xlane.xlu0 %469
        %v471 = vrcp.pop 32.0
        %v472 = vmul.f32 %v461, %v471
        %v473 = vmul.f32 %v464, %v471
        %v474 = vmul.f32 %v467, %v471
        %v475 = vmul.f32 %v470, %v471
        %v476 = vsub.f32 %v455, %v472
        %v477 = vsub.f32 %v456, %v473
        %v478 = vsub.f32 %v457, %v474
        %v479 = vsub.f32 %v458, %v475
        %v480 = vmul.f32 %v476, %v476
        %v481 = vmul.f32 %v477, %v477
        %v482 = vmul.f32 %v478, %v478
        %v483 = vmul.f32 %v479, %v479
        %v484 = vsel %vm291, %v480, 0.0
        %485 = vadd.xlane.f32.xlu0 %v484
        %v486 = vpop.xlane.xlu0 %485
        %v487 = vsel %vm291, %v481, 0.0
        %488 = vadd.xlane.f32.xlu0 %v487
        %v489 = vpop.xlane.xlu0 %488
        %v490 = vsel %vm291, %v482, 0.0
        %491 = vadd.xlane.f32.xlu0 %v490
        %v492 = vpop.xlane.xlu0 %491
        %v493 = vsel %vm291, %v483, 0.0
        %494 = vadd.xlane.f32.xlu0 %v493
        %v495 = vpop.xlane.xlu0 %494
        %v496 = vmul.f32 %v486, %v471
        %v497 = vmul.f32 %v489, %v471
        %v498 = vmul.f32 %v492, %v471
        %v499 = vmul.f32 %v495, %v471
        %v500 = vadd.f32 %v496, 1e-05
        %v501 = vadd.f32 %v497, 1e-05
        %v502 = vadd.f32 %v498, 1e-05
        %v503 = vadd.f32 %v499, 1e-05
        %v504 = vrsqrt.pop %v500
        %v505 = vrsqrt.pop %v501
        %v506 = vrsqrt.pop %v502
        %v507 = vrsqrt.pop %v503
        %v508 = vmul.f32 %v476, %v504
        %v509 = vmul.f32 %v477, %v505
        %v510 = vmul.f32 %v478, %v506
        %v511 = vmul.f32 %v479, %v507
        %v512 = vlaneseq
        %v513 = vshrl.u32 %v512, 7
        %v514 = vsub.s32 3, %v513
        %v515 = vrot.slane %v290, %v514
        %v516 = vmul.f32 %v508, %v515
        %v517 = vmul.f32 %v509, %v515
        %v518 = vmul.f32 %v510, %v515
        %v519 = vmul.f32 %v511, %v515
        %v520 = vlaneseq
        %v521 = vshrl.u32 %v520, 7
        %v522 = vsub.s32 4, %v521
        %v523 = vrot.slane %v290, %v522
        %v524 = vadd.f32 %v516, %v523
        %v525 = vadd.f32 %v517, %v523
        %v526 = vadd.f32 %v518, %v523
        %v527 = vadd.f32 %v519, %v523
        %v528 = vld [vmem:[#allocation5] sm:$0xff]
        %v529 = vld [vmem:[#allocation5 + $0x8] sm:$0xff]
        %v530 = vld [vmem:[#allocation5 + $0x10] sm:$0xff]
        %v531 = vld [vmem:[#allocation5 + $0x18] sm:$0xff]
        %v532 = vlaneseq
        %v533 = vshrl.u32 %v532, 7
        %v534 = vsub.s32 1, %v533
        %v535 = vrot.slane %v290, %v534
        %v537 = vsel %vm291, %v524, 0
        %v540 = vsel %vm291, %v525, 0
        %v543 = vsel %vm291, %v526, 0
        %v546 = vsel %vm291, %v527, 0
        %548 = vmatprep.subr.mxu0 0.0
        %549 = vmatpush1.msra.mxu0 0.0
        %550 = vmatprep.subr.mxu0 0.0
        %551 = vmatpush1.msra.mxu0 0.0
        %552 = vmatprep.subr.mxu0 0.0
        %553 = vmatpush1.msra.mxu0 0.0
        %554 = vmatprep.subr.mxu0 0.0
        %555 = vmatpush1.msra.mxu0 0.0
        %556 = vmatprep.subr.mxu0 0.0
        %557 = vmatpush1.msra.mxu0 0.0
        %558 = vmatprep.subr.mxu0 0.0
        %559 = vmatpush1.msra.mxu0 0.0
        %560 = vmatprep.subr.mxu0 0.0
        %561 = vmatpush1.msra.mxu0 0.0
        %562 = vmatprep.subr.mxu0 0.0
        %563 = vmatpush1.msra.mxu0 0.0
        %564 = vmatprep.subr.mxu0 0.0
        %565 = vmatpush1.msra.mxu0 0.0
        %566 = vmatprep.subr.mxu0 0.0
        %567 = vmatpush1.msra.mxu0 0.0
        %568 = vmatprep.subr.mxu0 0.0
        %569 = vmatpush1.msra.mxu0 0.0
        %570 = vmatprep.subr.mxu0 0.0
        %571 = vmatpush1.msra.mxu0 0.0
        %572 = vmatprep.subr.mxu0 0.0
        %573 = vmatpush1.msra.mxu0 %v531
        %574 = vmatprep.subr.mxu0 0.0
        %575 = vmatpush1.msra.mxu0 %v530
        %576 = vmatprep.subr.mxu0 0.0
        %577 = vmatpush1.msra.mxu0 %v529
        %578 = vmatprep.subr.mxu0 0.0
        %579 = vmatpush1.msra.mxu0 %v528
        %580 = vmatprep.subr.mxu0 0.0
        %581 = vmatpush2.msra.mxu0 0.0
        %582 = vmatprep.subr.mxu0 0.0
        %583 = vmatpush2.msra.mxu0 0.0
        %584 = vmatprep.subr.mxu0 0.0
        %585 = vmatpush2.msra.mxu0 0.0
        %586 = vmatprep.subr.mxu0 0.0
        %587 = vmatpush2.msra.mxu0 0.0
        %588 = vmatprep.subr.mxu0 0.0
        %589 = vmatpush2.msra.mxu0 0.0
        %590 = vmatprep.subr.mxu0 0.0
        %591 = vmatpush2.msra.mxu0 0.0
        %592 = vmatprep.subr.mxu0 0.0
        %593 = vmatpush2.msra.mxu0 0.0
        %594 = vmatprep.subr.mxu0 0.0
        %595 = vmatpush2.msra.mxu0 0.0
        %596 = vmatprep.subr.mxu0 0.0
        %597 = vmatpush2.msra.mxu0 0.0
        %598 = vmatprep.subr.mxu0 0.0
        %599 = vmatpush2.msra.mxu0 0.0
        %600 = vmatprep.subr.mxu0 0.0
        %601 = vmatpush2.msra.mxu0 0.0
        %602 = vmatprep.subr.mxu0 0.0
        %603 = vmatpush2.msra.mxu0 0.0
        %604 = vmatprep.subr.mxu0 0.0
        %605 = vmatpush2.msra.mxu0 0.0
        %606 = vmatprep.subr.mxu0 0.0
        %607 = vmatpush2.msra.mxu0 0.0
        %608 = vmatprep.subr.mxu0 0.0
        %609 = vmatpush2.msra.mxu0 0.0
        %610 = vmatprep.subr.mxu0 0.0
        %611 = vmatpush2.msra.mxu0 0.0
        %612 = vmatprep.mubr.f32.mxu0 0.0
        %613 = vmatmul.mubr.f32.gmra.mxu0 %v537
        %v614 = vpop.f32.mrf.mxu0
        %v615 = vadd.f32 %v535, %v614
        %v616 = vpop.f32.mrf.mxu0
        %617 = vmatprep.mubr.f32.mxu0 0.0
        %618 = vmatmul.mubr.f32.gmra.mxu0 %v540
        %v619 = vpop.f32.mrf.mxu0
        %v620 = vadd.f32 %v535, %v619
        %v621 = vpop.f32.mrf.mxu0
        %622 = vmatprep.mubr.f32.mxu0 0.0
        %623 = vmatmul.mubr.f32.gmra.mxu0 %v543
        %v624 = vpop.f32.mrf.mxu0
        %v625 = vadd.f32 %v535, %v624
        %v626 = vpop.f32.mrf.mxu0
        %627 = vmatprep.mubr.f32.mxu0 0.0
        %628 = vmatmul.mubr.f32.gmra.mxu0 %v546
        %v629 = vpop.f32.mrf.mxu0
        %v630 = vadd.f32 %v535, %v629
        %v631 = vpop.f32.mrf.mxu0
        %632 = vdwg.mxu0
        %v633 = vmax.f32 %v615, 0.0
        %v634 = vmax.f32 %v620, 0.0
        %v635 = vmax.f32 %v625, 0.0
        %v636 = vmax.f32 %v630, 0.0
        %v637 = vld [vmem:[%s4] sm:$0xff]
        %v638 = vld [vmem:[%s4 + $0x8] sm:$0xff]
        %v639 = vld [vmem:[%s4 + $0x10] sm:$0xff]
        %v640 = vld [vmem:[%s4 + $0x18] sm:$0xff]
        %v641 = vld [vmem:[%s4 + $0x20] sm:$0xff]
        %v642 = vld [vmem:[%s4 + $0x28] sm:$0xff]
        %v643 = vld [vmem:[%s4 + $0x30] sm:$0xff]
        %v644 = vld [vmem:[%s4 + $0x38] sm:$0xff]
        %v645 = vlaneseq
        %v646 = vshrl.u32 %v645, 7
        %v647 = vsub.s32 2, %v646
        %v648 = vrot.slane %v290, %v647
        %vm649 = vcmask 523264
        %v651 = vsel %vm649, %v633, 0
        %v654 = vsel %vm649, %v634, 0
        %v657 = vsel %vm649, %v635, 0
        %v660 = vsel %vm649, %v636, 0
        %662 = vmatprep.subr.mxu0 0.0
        %663 = vmatpush1.msra.mxu0 0.0
        %664 = vmatprep.subr.mxu0 0.0
        %665 = vmatpush1.msra.mxu0 0.0
        %666 = vmatprep.subr.mxu0 0.0
        %667 = vmatpush1.msra.mxu0 0.0
        %668 = vmatprep.subr.mxu0 0.0
        %669 = vmatpush1.msra.mxu0 0.0
        %670 = vmatprep.subr.mxu0 0.0
        %671 = vmatpush1.msra.mxu0 0.0
        %672 = vmatprep.subr.mxu0 0.0
        %673 = vmatpush1.msra.mxu0 0.0
        %674 = vmatprep.subr.mxu0 0.0
        %675 = vmatpush1.msra.mxu0 0.0
        %676 = vmatprep.subr.mxu0 0.0
        %677 = vmatpush1.msra.mxu0 0.0
        %678 = vmatprep.subr.mxu0 0.0
        %679 = vmatpush1.msra.mxu0 %v644
        %680 = vmatprep.subr.mxu0 0.0
        %681 = vmatpush1.msra.mxu0 %v643
        %682 = vmatprep.subr.mxu0 0.0
        %683 = vmatpush1.msra.mxu0 %v642
        %684 = vmatprep.subr.mxu0 0.0
        %685 = vmatpush1.msra.mxu0 %v641
        %686 = vmatprep.subr.mxu0 0.0
        %687 = vmatpush1.msra.mxu0 %v640
        %688 = vmatprep.subr.mxu0 0.0
        %689 = vmatpush1.msra.mxu0 %v639
        %690 = vmatprep.subr.mxu0 0.0
        %691 = vmatpush1.msra.mxu0 %v638
        %692 = vmatprep.subr.mxu0 0.0
        %693 = vmatpush1.msra.mxu0 %v637
        %694 = vmatprep.subr.mxu0 0.0
        %695 = vmatpush2.msra.mxu0 0.0
        %696 = vmatprep.subr.mxu0 0.0
        %697 = vmatpush2.msra.mxu0 0.0
        %698 = vmatprep.subr.mxu0 0.0
        %699 = vmatpush2.msra.mxu0 0.0
        %700 = vmatprep.subr.mxu0 0.0
        %701 = vmatpush2.msra.mxu0 0.0
        %702 = vmatprep.subr.mxu0 0.0
        %703 = vmatpush2.msra.mxu0 0.0
        %704 = vmatprep.subr.mxu0 0.0
        %705 = vmatpush2.msra.mxu0 0.0
        %706 = vmatprep.subr.mxu0 0.0
        %707 = vmatpush2.msra.mxu0 0.0
        %708 = vmatprep.subr.mxu0 0.0
        %709 = vmatpush2.msra.mxu0 0.0
        %710 = vmatprep.subr.mxu0 0.0
        %711 = vmatpush2.msra.mxu0 0.0
        %712 = vmatprep.subr.mxu0 0.0
        %713 = vmatpush2.msra.mxu0 0.0
        %714 = vmatprep.subr.mxu0 0.0
        %715 = vmatpush2.msra.mxu0 0.0
        %716 = vmatprep.subr.mxu0 0.0
        %717 = vmatpush2.msra.mxu0 0.0
        %718 = vmatprep.subr.mxu0 0.0
        %719 = vmatpush2.msra.mxu0 0.0
        %720 = vmatprep.subr.mxu0 0.0
        %721 = vmatpush2.msra.mxu0 0.0
        %722 = vmatprep.subr.mxu0 0.0
        %723 = vmatpush2.msra.mxu0 0.0
        %724 = vmatprep.subr.mxu0 0.0
        %725 = vmatpush2.msra.mxu0 0.0
        %726 = vmatprep.mubr.f32.mxu0 0.0
        %727 = vmatmul.mubr.f32.gmra.mxu0 %v651
        %v728 = vpop.f32.mrf.mxu0
        %v729 = vadd.f32 %v648, %v728
        %v730 = vpop.f32.mrf.mxu0
        %731 = vmatprep.mubr.f32.mxu0 0.0
        %732 = vmatmul.mubr.f32.gmra.mxu0 %v654
        %v733 = vpop.f32.mrf.mxu0
        %v734 = vadd.f32 %v648, %v733
        %v735 = vpop.f32.mrf.mxu0
        %736 = vmatprep.mubr.f32.mxu0 0.0
        %737 = vmatmul.mubr.f32.gmra.mxu0 %v657
        %v738 = vpop.f32.mrf.mxu0
        %v739 = vadd.f32 %v648, %v738
        %v740 = vpop.f32.mrf.mxu0
        %741 = vmatprep.mubr.f32.mxu0 0.0
        %742 = vmatmul.mubr.f32.gmra.mxu0 %v660
        %v743 = vpop.f32.mrf.mxu0
        %v744 = vadd.f32 %v648, %v743
        %v745 = vpop.f32.mrf.mxu0
        %746 = vdwg.mxu0
        %v747 = vadd.f32 %v729, %v524
        %v748 = vadd.f32 %v734, %v525
        %v749 = vadd.f32 %v739, %v526
        %v750 = vadd.f32 %v744, %v527
        %v751 = vsel %vm291, %v747, 0.0
        %752 = vadd.xlane.f32.xlu0 %v751
        %v753 = vpop.xlane.xlu0 %752
        %v754 = vsel %vm291, %v748, 0.0
        %755 = vadd.xlane.f32.xlu0 %v754
        %v756 = vpop.xlane.xlu0 %755
        %v757 = vsel %vm291, %v749, 0.0
        %758 = vadd.xlane.f32.xlu0 %v757
        %v759 = vpop.xlane.xlu0 %758
        %v760 = vsel %vm291, %v750, 0.0
        %761 = vadd.xlane.f32.xlu0 %v760
        %v762 = vpop.xlane.xlu0 %761
        %v763 = vmul.f32 %v753, %v471
        %v764 = vmul.f32 %v756, %v471
        %v765 = vmul.f32 %v759, %v471
        %v766 = vmul.f32 %v762, %v471
        %v767 = vsub.f32 %v747, %v763
        %v768 = vsub.f32 %v748, %v764
        %v769 = vsub.f32 %v749, %v765
        %v770 = vsub.f32 %v750, %v766
        %v771 = vmul.f32 %v767, %v767
        %v772 = vmul.f32 %v768, %v768
        %v773 = vmul.f32 %v769, %v769
        %v774 = vmul.f32 %v770, %v770
        %v775 = vsel %vm291, %v771, 0.0
        %776 = vadd.xlane.f32.xlu0 %v775
        %v777 = vpop.xlane.xlu0 %776
        %v778 = vsel %vm291, %v772, 0.0
        %779 = vadd.xlane.f32.xlu0 %v778
        %v780 = vpop.xlane.xlu0 %779
        %v781 = vsel %vm291, %v773, 0.0
        %782 = vadd.xlane.f32.xlu0 %v781
        %v783 = vpop.xlane.xlu0 %782
        %v784 = vsel %vm291, %v774, 0.0
        %785 = vadd.xlane.f32.xlu0 %v784
        %v786 = vpop.xlane.xlu0 %785
        %v787 = vmul.f32 %v777, %v471
        %v788 = vmul.f32 %v780, %v471
        %v789 = vmul.f32 %v783, %v471
        %v790 = vmul.f32 %v786, %v471
        %v791 = vadd.f32 %v787, 1e-05
        %v792 = vadd.f32 %v788, 1e-05
        %v793 = vadd.f32 %v789, 1e-05
        %v794 = vadd.f32 %v790, 1e-05
        %v795 = vrsqrt.pop %v791
        %v796 = vrsqrt.pop %v792
        %v797 = vrsqrt.pop %v793
        %v798 = vrsqrt.pop %v794
        %v799 = vmul.f32 %v767, %v795
        %v800 = vmul.f32 %v768, %v796
        %v801 = vmul.f32 %v769, %v797
        %v802 = vmul.f32 %v770, %v798
        %v803 = vlaneseq
        %v804 = vshrl.u32 %v803, 7
        %v805 = vsub.s32 5, %v804
        %v806 = vrot.slane %v290, %v805
        %v807 = vmul.f32 %v799, %v806
        %v808 = vmul.f32 %v800, %v806
        %v809 = vmul.f32 %v801, %v806
        %v810 = vmul.f32 %v802, %v806
        %v811 = vlaneseq
        %v812 = vshrl.u32 %v811, 7
        %v813 = vsub.s32 6, %v812
        %v814 = vrot.slane %v290, %v813
        %v815 = vadd.f32 %v807, %v814
        %v816 = vadd.f32 %v808, %v814
        %v817 = vadd.f32 %v809, %v814
        %v818 = vadd.f32 %v810, %v814
        %819 = vst.msk [vmem:[%s273] sm:$0xff] %vm291, %v815
        %820 = vst.msk [vmem:[%s273 + $0x8] sm:$0xff] %vm291, %v816
        %821 = vst.msk [vmem:[%s273 + $0x10] sm:$0xff] %vm291, %v817
        %822 = vst.msk [vmem:[%s273 + $0x18] sm:$0xff] %vm291, %v818
        %s823 = sand.u32 %s161, 1
        %s824 = scalar_lea.sflag [#allocation4], %s823
        %s825 = sand.u32 %s161, 1
        %s826 = smul.addr %s825, 32
        %s827 = scalar_lea.vmem [#allocation7], %s826
        // Predicated region
        $region53: #{tpu_custom_call.1} parent=43 // pred_check
          %p828 = pneg %p171
        $region54: #{tpu_custom_call.1} parent=43 // pred_check_branch
          %830 = sbr.rel (%p828) target = $region56
        $region55: #{tpu_custom_call.1} parent=43 // pred_region
          %s831 = smul.u32 4, %s22
          %s833 = ssub.s32 512, 512
          %834 = vsyncadd %s824, %s833
          %s835 = smul.addr %s831, 128
          %s836 = scalar_lea.hbm %s6, %s835
          %s837 = sshll.u32 %s827, 4
          %s838 = int_to_ptr.vmem [resolvable:$true] %s837
          %843 = dma.vmem_to_hbm [thread:$0]  %s838, 512, %s836, %s824, 128, 128, 8
        $region56: #{tpu_custom_call.1} parent=43 // pred_fallthru
          _
      $region44: #{tpu_custom_call.1} parent=5 // pred_fallthru
        _
      %p844 = scmp.le.s32.totalorder 2, %s17
      // Predicated region
      $region57: #{tpu_custom_call.1} parent=5 // pred_check
        %p845 = pneg %p844
      $region58: #{tpu_custom_call.1} parent=5 // pred_check_branch
        %847 = sbr.rel (%p845) target = $region60
      $region59: #{tpu_custom_call.1} parent=5 // pred_region
        %s848 = ssub.s32 %s17, 2
        // Predicated region
        $region61: #{tpu_custom_call.1} parent=59 // pred_check
          %p849 = pneg %p177
        $region62: #{tpu_custom_call.1} parent=59 // pred_check_branch
          %851 = sbr.rel (%p849) target = $region64
        $region63: #{tpu_custom_call.1} parent=59 // pred_region
          %s852 = sand.u32 %s162, 1
          %s853 = scalar_lea.sflag [#allocation4], %s852
          %s854 = sand.u32 %s162, 1
          %s855 = smul.addr %s854, 32
          %s856 = scalar_lea.vmem [#allocation7], %s855
          %857 = dma.done %s853, 512
        $region64: #{tpu_custom_call.1} parent=59 // pred_fallthru
          _
      $region60: #{tpu_custom_call.1} parent=5 // pred_fallthru
        _
    $region6: #{tpu_custom_call.1} parent=1 // loop_footer
      %s21 = sadd.s32 1, %s17
    $region7: #{tpu_custom_call.1} parent=1 // loop_footer_branch
      %16 = sbr.rel target = $region3
    $region8: #{tpu_custom_call.1} parent=1 // loop_exit
      _
    %858 = vsyncpa [#allocation3], 1
    %s859 = scalar_lea.sflag [#allocation3], 1
    %860 = vsyncpa %s859, 1
    %861 = vsyncpa [#allocation6], 1
    %862 = vsyncpa [#allocation4], 1
    %s863 = scalar_lea.sflag [#allocation4], 1
    %864 = vsyncpa %s863, 1

</llo_original>
